<compile_context>
chip_gen: v6e
topology: v6e:2x2x1
jax: 0.10.0
libtpu: 0.0.40
codegen_flags: <defaults>
</compile_context>

<pallas_src>
import jax
import jax.numpy as jnp
import numpy as np
from jax.experimental import pallas as pl
from jax.experimental.pallas import tpu as pltpu


def _round_up(x, m):
    return ((x + m - 1) // m) * m


def _cam_encode_kernel(x_ref, wd_ref, wc_ref, bd_ref, bc_ref, out_ref, depth_ref):
    # x_ref:     (inputC, T)  pixel slab, pixels on the lane axis
    # wd_ref:    (D, inputC)  depth half of the 1x1 conv weight
    # wc_ref:    (C, inputC)  feature half of the 1x1 conv weight
    # bd_ref:    (D, 1), bc_ref: (C, 1)  biases
    # out_ref:   (C, D, T)    lifted features, already in target layout
    # depth_ref: (D, T)
    x = x_ref[...]

    # 1x1 conv == matmul on the MXU (f32 accumulation; bf16 inputs supported
    # transparently if the caller passes bf16 x/weights).
    logits = jnp.dot(wd_ref[...], x, preferred_element_type=jnp.float32) + bd_ref[...]
    feat = jnp.dot(wc_ref[...], x, preferred_element_type=jnp.float32) + bc_ref[...]

    # Numerically-stable softmax over the D depth bins (axis 0).
    m = jnp.max(logits, axis=0, keepdims=True)
    e = jnp.exp(logits - m)
    inv = pl.reciprocal(jnp.sum(e, axis=0, keepdims=True), approx=True)  # EUP slot
    depth = e * inv                                                       # (D, T)

    depth_ref[...] = depth.astype(depth_ref.dtype)
    # new_x[c, d, hw] = feat[c, hw] * depth[d, hw]; lanes (hw) stay dense.
    out_ref[...] = (feat[:, None, :] * depth[None, :, :]).astype(out_ref.dtype)


def cam_encode_forward(x_nchw, weight, bias, D, C, *, tile_hw=1024,
                       out_dtype=jnp.float32):
    """CamEncode forward.

    x_nchw: (B, inputC, H, W); weight: (inputC, D+C); bias: (D+C,)
    returns new_x: (B, C, D, H, W), depth: (B, D, H, W)
    """
    B, inputC, H, W = x_nchw.shape
    HW = H * W
    tile_hw = min(tile_hw, _round_up(HW, 128))
    assert tile_hw % 128 == 0
    HWp = _round_up(HW, tile_hw)
    num_t = HWp // tile_hw

    # NCHW -> (B, inputC, HW) is a free reshape; pad pixel axis to the tile.
    x_flat = x_nchw.reshape(B, inputC, HW)
    if HWp != HW:
        x_flat = jnp.pad(x_flat, ((0, 0), (0, 0), (0, HWp - HW)))

    # Split the 1x1 conv into depth / feature halves, laid out (out, in) so the
    # kernel computes W @ x directly in the target layout.
    wd = jnp.transpose(weight[:, :D])           # (D, inputC)
    wc = jnp.transpose(weight[:, D:D + C])      # (C, inputC)
    bd = bias[:D].reshape(D, 1).astype(jnp.float32)
    bc = bias[D:D + C].reshape(C, 1).astype(jnp.float32)

    # VMEM budget: double-buffered blocked operands + resident weights, capped
    # at 64 MiB so it also fits v7x's smaller VMEM.
    itm_x = jnp.dtype(x_flat.dtype).itemsize
    itm_o = jnp.dtype(out_dtype).itemsize
    blk_bytes = inputC * tile_hw * itm_x + (C * D + D) * tile_hw * itm_o
    wgt_bytes = (D + C) * (inputC + 1) * 4
    vmem_limit = int(min(max(4 * (blk_bytes + wgt_bytes), 32 << 20), 64 << 20))

    out_p, depth_p = pl.pallas_call(
        _cam_encode_kernel,
        out_shape=(
            jax.ShapeDtypeStruct((B, C, D, HWp), out_dtype),
            jax.ShapeDtypeStruct((B, D, HWp), out_dtype),
        ),
        grid_spec=pltpu.PrefetchScalarGridSpec(
            num_scalar_prefetch=0,
            grid=(B, num_t),
            in_specs=[
                pl.BlockSpec((None, inputC, tile_hw), lambda b, t: (b, 0, t)),
                pl.BlockSpec((D, inputC), lambda b, t: (0, 0)),
                pl.BlockSpec((C, inputC), lambda b, t: (0, 0)),
                pl.BlockSpec((D, 1), lambda b, t: (0, 0)),
                pl.BlockSpec((C, 1), lambda b, t: (0, 0)),
            ],
            out_specs=[
                pl.BlockSpec((None, C, D, tile_hw), lambda b, t: (b, 0, 0, t)),
                pl.BlockSpec((None, D, tile_hw), lambda b, t: (b, 0, t)),
            ],
        ),
        compiler_params=pltpu.CompilerParams(
            dimension_semantics=("parallel", "parallel"),
            vmem_limit_bytes=vmem_limit),
    )(x_flat, wd, wc, bd, bc)

    # Free reshapes (plus a slice only when HW needed padding).
    new_x = out_p[..., :HW].reshape(B, C, D, H, W)
    depth = depth_p[..., :HW].reshape(B, D, H, W)
    return new_x, depth


def _reference_forward(x_nchw, weight, bias, D, C):
    """Pure-JAX reference mirroring the PyTorch module semantics."""
    y = jnp.einsum("bihw,io->bohw", x_nchw, weight) + bias[None, :, None, None]
    logits = y[:, :D]
    feat = y[:, D:D + C]
    depth = jax.nn.softmax(logits, axis=1)                    # (B, D, H, W)
    new_x = depth[:, None, :, :, :] * feat[:, :, None, :, :]  # (B, C, D, H, W)
    return new_x, depth


if __name__ == "__main__":
    cases = [
        dict(B=2, inputC=16, H=16, W=16, D=8, C=16),   # HW multiple of 128
        dict(B=1, inputC=24, H=10, W=10, D=16, C=8),   # ragged HW -> padded tile
    ]
    key = jax.random.PRNGKey(0)
    for cfg in cases:
        B, inputC, H, W, D, C = (cfg[k] for k in ("B", "inputC", "H", "W", "D", "C"))
        key, kx, kw, kb = jax.random.split(key, 4)
        x = jax.random.normal(kx, (B, inputC, H, W), dtype=jnp.float32)
        # Deterministic synthetic conv params (Conv2d(inputC, D+C, k=1)).
        weight = jax.random.normal(kw, (inputC, D + C), dtype=jnp.float32) * 0.1
        bias = jax.random.normal(kb, (D + C,), dtype=jnp.float32) * 0.1

        new_x, depth = cam_encode_forward(x, weight, bias, D, C)
        jax.block_until_ready((new_x, depth))

        ref_x, ref_depth = _reference_forward(x, weight, bias, D, C)
        # approx reciprocal in the softmax -> tolerance relaxed from 1e-5 to 1e-3
        np.testing.assert_allclose(np.asarray(depth), np.asarray(ref_depth),
                                   rtol=1e-3, atol=1e-3)
        np.testing.assert_allclose(np.asarray(new_x), np.asarray(ref_x),
                                   rtol=1e-3, atol=1e-3)
        assert new_x.shape == (B, C, D, H, W)
        assert depth.shape == (B, D, H, W)
    print("KERNEL_OK")
</pallas_src>

<mosaic_0001>
module attributes {stable_mosaic.version = 11 : i64} {
  func.func @_cam_encode_kernel(%arg0: i32, %arg1: i32, %arg2: memref<1x16x256xf32, #tpu.memory_space<vmem>>, %arg3: memref<8x16xf32, #tpu.memory_space<vmem>>, %arg4: memref<16x16xf32, #tpu.memory_space<vmem>>, %arg5: memref<8x1xf32, #tpu.memory_space<vmem>>, %arg6: memref<16x1xf32, #tpu.memory_space<vmem>>, %arg7: memref<1x16x8x256xf32, #tpu.memory_space<vmem>>, %arg8: memref<1x8x256xf32, #tpu.memory_space<vmem>>) attributes {dimension_semantics = [#tpu.dimension_semantics<parallel>, #tpu.dimension_semantics<parallel>], iteration_bounds = array<i64: 2, 1>, scalar_prefetch = 0 : i64, scratch_operands = 0 : i64, tpu.core_type = #tpu.core_type<tc>, window_params = [{transform_indices = @transform_0, window_bounds = array<i64: 1, 16, 256>}, {pipeline_mode = #tpu.pipeline_mode<synchronous>, transform_indices = @transform_1, window_bounds = array<i64: 8, 16>}, {pipeline_mode = #tpu.pipeline_mode<synchronous>, transform_indices = @transform_2, window_bounds = array<i64: 16, 16>}, {pipeline_mode = #tpu.pipeline_mode<synchronous>, transform_indices = @transform_3, window_bounds = array<i64: 8, 1>}, {pipeline_mode = #tpu.pipeline_mode<synchronous>, transform_indices = @transform_4, window_bounds = array<i64: 16, 1>}, {transform_indices = @transform_5, window_bounds = array<i64: 1, 16, 8, 256>}, {transform_indices = @transform_6, window_bounds = array<i64: 1, 8, 256>}]} {
    %c0 = arith.constant 0 : index
    %c0_0 = arith.constant 0 : index
    %c0_1 = arith.constant 0 : index
    %0 = vector.load %arg2[%c0, %c0_0, %c0_1] : memref<1x16x256xf32, #tpu.memory_space<vmem>>, vector<1x16x256xf32>
    %1 = vector.shape_cast %0 : vector<1x16x256xf32> to vector<16x256xf32>
    %c0_2 = arith.constant 0 : index
    %c0_3 = arith.constant 0 : index
    %2 = vector.load %arg3[%c0_2, %c0_3] : memref<8x16xf32, #tpu.memory_space<vmem>>, vector<8x16xf32>
    %cst = arith.constant dense<0.000000e+00> : vector<8x256xf32>
    %3 = tpu.matmul %2, %1, %cst {dimension_numbers = #tpu.dot_dimension_numbers<[1], [0], [0], [1], [0, 0, 1, 1], [], []>} : vector<8x16xf32>, vector<16x256xf32>, vector<8x256xf32> -> vector<8x256xf32>
    %c0_4 = arith.constant 0 : index
    %c0_5 = arith.constant 0 : index
    %4 = vector.load %arg5[%c0_4, %c0_5] : memref<8x1xf32, #tpu.memory_space<vmem>>, vector<8x1xf32>
    %5 = vector.broadcast %4 : vector<8x1xf32> to vector<8x256xf32>
    %6 = arith.addf %3, %5 : vector<8x256xf32>
    %c0_6 = arith.constant 0 : index
    %c0_7 = arith.constant 0 : index
    %7 = vector.load %arg4[%c0_6, %c0_7] : memref<16x16xf32, #tpu.memory_space<vmem>>, vector<16x16xf32>
    %cst_8 = arith.constant dense<0.000000e+00> : vector<16x256xf32>
    %8 = tpu.matmul %7, %1, %cst_8 {dimension_numbers = #tpu.dot_dimension_numbers<[1], [0], [0], [1], [0, 0, 1, 1], [], []>} : vector<16x16xf32>, vector<16x256xf32>, vector<16x256xf32> -> vector<16x256xf32>
    %c0_9 = arith.constant 0 : index
    %c0_10 = arith.constant 0 : index
    %9 = vector.load %arg6[%c0_9, %c0_10] : memref<16x1xf32, #tpu.memory_space<vmem>>, vector<16x1xf32>
    %10 = vector.broadcast %9 : vector<16x1xf32> to vector<16x256xf32>
    %11 = arith.addf %8, %10 : vector<16x256xf32>
    %cst_11 = arith.constant dense<0xFF800000> : vector<256xf32>
    %12 = vector.multi_reduction <maximumf>, %6, %cst_11 [0] : vector<8x256xf32> to vector<256xf32>
    %13 = vector.shape_cast %12 : vector<256xf32> to vector<1x256xf32>
    %14 = vector.broadcast %13 : vector<1x256xf32> to vector<8x256xf32>
    %15 = arith.subf %6, %14 : vector<8x256xf32>
    %16 = math.exp %15 : vector<8x256xf32>
    %cst_12 = arith.constant dense<0.000000e+00> : vector<256xf32>
    %17 = vector.multi_reduction <add>, %16, %cst_12 [0] : vector<8x256xf32> to vector<256xf32>
    %18 = vector.shape_cast %17 : vector<256xf32> to vector<1x256xf32>
    %19 = tpu.reciprocal %18 {approx = true} : vector<1x256xf32> -> vector<1x256xf32>
    %20 = vector.broadcast %19 : vector<1x256xf32> to vector<8x256xf32>
    %21 = arith.mulf %16, %20 : vector<8x256xf32>
    %c0_13 = arith.constant 0 : index
    %c0_14 = arith.constant 0 : index
    %c0_15 = arith.constant 0 : index
    %22 = vector.load %arg8[%c0_13, %c0_14, %c0_15] : memref<1x8x256xf32, #tpu.memory_space<vmem>>, vector<1x8x256xf32>
    %23 = vector.shape_cast %22 : vector<1x8x256xf32> to vector<8x256xf32>
    %24 = vector.shape_cast %21 : vector<8x256xf32> to vector<1x8x256xf32>
    tpu.vector_store %arg8[%c0_13, %c0_14, %c0_15], %24 {strides = array<i32>} : memref<1x8x256xf32, #tpu.memory_space<vmem>>, vector<1x8x256xf32>,
    %25 = vector.shape_cast %11 : vector<16x256xf32> to vector<16x1x256xf32>
    %26 = vector.shape_cast %21 : vector<8x256xf32> to vector<1x8x256xf32>
    %27 = vector.broadcast %25 : vector<16x1x256xf32> to vector<16x8x256xf32>
    %28 = vector.broadcast %26 : vector<1x8x256xf32> to vector<16x8x256xf32>
    %29 = arith.mulf %27, %28 : vector<16x8x256xf32>
    %c0_16 = arith.constant 0 : index
    %c0_17 = arith.constant 0 : index
    %c0_18 = arith.constant 0 : index
    %c0_19 = arith.constant 0 : index
    %30 = vector.load %arg7[%c0_16, %c0_17, %c0_18, %c0_19] : memref<1x16x8x256xf32, #tpu.memory_space<vmem>>, vector<1x16x8x256xf32>
    %31 = vector.shape_cast %30 : vector<1x16x8x256xf32> to vector<16x8x256xf32>
    %32 = vector.shape_cast %29 : vector<16x8x256xf32> to vector<1x16x8x256xf32>
    tpu.vector_store %arg7[%c0_16, %c0_17, %c0_18, %c0_19], %32 {strides = array<i32>} : memref<1x16x8x256xf32, #tpu.memory_space<vmem>>, vector<1x16x8x256xf32>,
    return
  }
  func.func @transform_0(%arg0: i32, %arg1: i32) -> (i32, i32, i32) {
    %c0_i32 = arith.constant 0 : i32
    %c0_i32_0 = arith.constant 0 : i32
    return %arg0, %c0_i32, %arg1 : i32, i32, i32
  }
  func.func @transform_1(%arg0: i32, %arg1: i32) -> (i32, i32) {
    %c0_i32 = arith.constant 0 : i32
    %c0_i32_0 = arith.constant 0 : i32
    %c0_i32_1 = arith.constant 0 : i32
    return %c0_i32, %c0_i32_0 : i32, i32
  }
  func.func @transform_2(%arg0: i32, %arg1: i32) -> (i32, i32) {
    %c0_i32 = arith.constant 0 : i32
    %c0_i32_0 = arith.constant 0 : i32
    %c0_i32_1 = arith.constant 0 : i32
    return %c0_i32, %c0_i32_0 : i32, i32
  }
  func.func @transform_3(%arg0: i32, %arg1: i32) -> (i32, i32) {
    %c0_i32 = arith.constant 0 : i32
    %c0_i32_0 = arith.constant 0 : i32
    %c0_i32_1 = arith.constant 0 : i32
    return %c0_i32, %c0_i32_0 : i32, i32
  }
  func.func @transform_4(%arg0: i32, %arg1: i32) -> (i32, i32) {
    %c0_i32 = arith.constant 0 : i32
    %c0_i32_0 = arith.constant 0 : i32
    %c0_i32_1 = arith.constant 0 : i32
    return %c0_i32, %c0_i32_0 : i32, i32
  }
  func.func @transform_5(%arg0: i32, %arg1: i32) -> (i32, i32, i32, i32) {
    %c0_i32 = arith.constant 0 : i32
    %c0_i32_0 = arith.constant 0 : i32
    %c0_i32_1 = arith.constant 0 : i32
    return %arg0, %c0_i32, %c0_i32_0, %arg1 : i32, i32, i32, i32
  }
  func.func @transform_6(%arg0: i32, %arg1: i32) -> (i32, i32, i32) {
    %c0_i32 = arith.constant 0 : i32
    %c0_i32_0 = arith.constant 0 : i32
    return %arg0, %c0_i32, %arg1 : i32, i32, i32
  }
}

</mosaic_0001>

<llo_original>
// kernel: tpu_custom_call.1
$region0: #{tpu_custom_call.1}
  #allocation0 [shape = 'u32[]', space=smem, size = 0x4, offset = 0x4, fixed_abs, tag = 'smem constant byte address 0x4 - core index']
  #allocation1 [shape = 'u32[144,128]{1,0:T(1,128)}', space=vmem, size = 0x12000, scoped, tag = 'internal scratch']
  %s0 = inlined_call_operand.hbm [shape: f32[2,16,256], index: 0, kind: input, shape index: {}]
  %s1 = inlined_call_operand.vmem [shape: f32[8,16], index: 1, kind: input, shape index: {}]
  %s2 = inlined_call_operand.vmem [shape: f32[16,16], index: 2, kind: input, shape index: {}]
  %s3 = inlined_call_operand.vmem [shape: f32[8,1], index: 3, kind: input, shape index: {}]
  %s4 = inlined_call_operand.vmem [shape: f32[16,1], index: 4, kind: input, shape index: {}]
  %s5 = inlined_call_operand.hbm [shape: f32[2,16,8,256], index: 5, kind: output, shape index: {0}]
  %s6 = inlined_call_operand.hbm [shape: f32[2,8,256], index: 6, kind: output, shape index: {1}]
  %7 = xla_tuple %s5, %s6
  %s8 = sld [smem:[#allocation0]]
  $region65: #{tpu_custom_call.1} parent=0
    _
  %s10 = ssub.s32 1, %s8
  %s11 = scalar_select 0, %s10, %s8
  $region1: #{tpu_custom_call.1} parent=0
    #allocation2 [shape = 'u8[32768]{0}', space=vmem, size = 0x8000, scoped, tag = 'input window, operand 0']
    #allocation3 [shape = 's32[2]{0}', space=sflag, size = 0x8, scoped, tag = 'scoped memory for tpu_custom_call.1']
    #allocation4 [shape = 's32[2]{0}', space=sflag, size = 0x8, scoped, tag = 'scoped memory for tpu_custom_call.1']
    #allocation5 [shape = 'u8[262144]{0}', space=vmem, size = 0x40000, scoped, tag = 'output window, operand 0']
    #allocation6 [shape = 'u8[16384]{0}', space=vmem, size = 0x4000, scoped, tag = 'output window, operand 1']
    #allocation7 [shape = 's32[2]{0}', space=sflag, size = 0x8, scoped, tag = 'scoped memory for tpu_custom_call.1']
    %12 = vsyncpa [#allocation3], 0
    %s13 = scalar_lea.sflag [#allocation3], 1
    %14 = vsyncpa %s13, 0
    %15 = vsyncpa [#allocation4], 0
    %s16 = scalar_lea.sflag [#allocation4], 1
    %17 = vsyncpa %s16, 0
    %18 = vsyncpa [#allocation7], 0
    %s19 = scalar_lea.sflag [#allocation7], 1
    %20 = vsyncpa %s19, 0
    loop: start=0, step=1, limit=4
    $region2: #{tpu_custom_call.1} parent=1 // loop_pre_header
      _
    $region3: #{tpu_custom_call.1} parent=1 // loop_header
      %s22 = sphi 0, %s26
      %p23 = scmp.ge.s32.totalorder %s22, 4
      %s29 = sphi 0, %s41
      %s30 = sphi 0, %s37
      %s31 = sphi 0, %s29
      %s32 = sphi 0, %s30
      %s33 = sphi 0, %s31
      %s34 = sphi 0, %s32
      %s46 = sphi 0, %s48
      %s49 = sphi 0, %s46
      %s50 = sphi 0, %s49
      %s66 = sphi 0, %s50
      %s70 = sphi 0, %s70
      %s72 = sphi 0, %s70
      %s73 = sphi 0, %s72
      %s87 = sphi 0, %s73
      %s91 = sphi 0, %s91
      %s93 = sphi 0, %s91
      %s94 = sphi 0, %s93
      %s108 = sphi 0, %s94
      %s112 = sphi 0, %s112
      %s114 = sphi 0, %s112
      %s115 = sphi 0, %s114
      %s129 = sphi 0, %s115
      %s133 = sphi 0, %s133
      %s135 = sphi 0, %s133
      %s136 = sphi 0, %s135
      %s150 = sphi 0, %s136
      %s158 = sphi 0, %s160
      %s161 = sphi 0, %s158
      %s162 = sphi 0, %s161
      %s178 = sphi 0, %s162
      %s186 = sphi 0, %s188
      %s189 = sphi 0, %s186
      %s190 = sphi 0, %s189
      %s206 = sphi 0, %s190
    $region4: #{tpu_custom_call.1} parent=1 // loop_header_branch
      %25 = sbr.rel (%p23) target = $region8
    $region5: #{tpu_custom_call.1} parent=1 // loop_body
      %s27 = ssub.s32 %s22, 1
      %s28 = ssub.s32 %s22, 2
      %s35 = sadd.s32 1, %s30
      %p36 = scmp.ge.s32.totalorder %s35, 1
      %s37 = scalar_select %p36, 0, %s35
      %s38 = sadd.s32 1, %s29
      %s39 = scalar_select %p36, %s38, %s29
      %p40 = scmp.ge.s32.totalorder %s39, 2
      %s41 = scalar_select %p40, 0, %s39
      %s42 = ssub.s32 %s29, %s41
      %s43 = ssub.s32 %s30, %s37
      %s44 = sor.u32 %s42, %s43
      %p45 = scmp.eq.s32.totalorder %s44, 0
      %s47 = sadd.s32 %s46, 1
      %s48 = scalar_select %p45, %s46, %s47
      %p51 = pneg %p45
      %p52 = scmp.eq.s32.totalorder %s22, 1
      %p53 = por %p51, %p52
      %p54 = scmp.ne.s32.totalorder %s46, %s49
      %p55 = scmp.eq.s32.totalorder %s22, 0
      %p56 = por %p54, %p55
      %p57 = scmp.ne.s32.totalorder %s46, %s49
      %p58 = scmp.eq.s32.totalorder %s27, 1
      %p59 = por %p57, %p58
      %p60 = scmp.ne.s32.totalorder %s49, %s50
      %p61 = scmp.eq.s32.totalorder %s27, 0
      %p62 = por %p60, %p61
      %p63 = scmp.ne.s32.totalorder %s49, %s50
      %p64 = scmp.eq.s32.totalorder %s28, 1
      %p65 = por %p63, %p64
      %p67 = scmp.ne.s32.totalorder %s50, %s66
      %p68 = scmp.eq.s32.totalorder %s28, 0
      %p69 = por %p67, %p68
      %s71 = sadd.s32 %s70, 1
      %p74 = scmp.eq.s32.totalorder %s22, 1
      %p75 = scmp.ne.s32.totalorder %s70, %s72
      %p76 = scmp.eq.s32.totalorder %s22, 0
      %p77 = por %p75, %p76
      %p78 = scmp.ne.s32.totalorder %s70, %s72
      %p79 = scmp.eq.s32.totalorder %s27, 1
      %p80 = por %p78, %p79
      %p81 = scmp.ne.s32.totalorder %s72, %s73
      %p82 = scmp.eq.s32.totalorder %s27, 0
      %p83 = por %p81, %p82
      %p84 = scmp.ne.s32.totalorder %s72, %s73
      %p85 = scmp.eq.s32.totalorder %s28, 1
      %p86 = por %p84, %p85
      %p88 = scmp.ne.s32.totalorder %s73, %s87
      %p89 = scmp.eq.s32.totalorder %s28, 0
      %p90 = por %p88, %p89
      %s92 = sadd.s32 %s91, 1
      %p95 = scmp.eq.s32.totalorder %s22, 1
      %p96 = scmp.ne.s32.totalorder %s91, %s93
      %p97 = scmp.eq.s32.totalorder %s22, 0
      %p98 = por %p96, %p97
      %p99 = scmp.ne.s32.totalorder %s91, %s93
      %p100 = scmp.eq.s32.totalorder %s27, 1
      %p101 = por %p99, %p100
      %p102 = scmp.ne.s32.totalorder %s93, %s94
      %p103 = scmp.eq.s32.totalorder %s27, 0
      %p104 = por %p102, %p103
      %p105 = scmp.ne.s32.totalorder %s93, %s94
      %p106 = scmp.eq.s32.totalorder %s28, 1
      %p107 = por %p105, %p106
      %p109 = scmp.ne.s32.totalorder %s94, %s108
      %p110 = scmp.eq.s32.totalorder %s28, 0
      %p111 = por %p109, %p110
      %s113 = sadd.s32 %s112, 1
      %p116 = scmp.eq.s32.totalorder %s22, 1
      %p117 = scmp.ne.s32.totalorder %s112, %s114
      %p118 = scmp.eq.s32.totalorder %s22, 0
      %p119 = por %p117, %p118
      %p120 = scmp.ne.s32.totalorder %s112, %s114
      %p121 = scmp.eq.s32.totalorder %s27, 1
      %p122 = por %p120, %p121
      %p123 = scmp.ne.s32.totalorder %s114, %s115
      %p124 = scmp.eq.s32.totalorder %s27, 0
      %p125 = por %p123, %p124
      %p126 = scmp.ne.s32.totalorder %s114, %s115
      %p127 = scmp.eq.s32.totalorder %s28, 1
      %p128 = por %p126, %p127
      %p130 = scmp.ne.s32.totalorder %s115, %s129
      %p131 = scmp.eq.s32.totalorder %s28, 0
      %p132 = por %p130, %p131
      %s134 = sadd.s32 %s133, 1
      %p137 = scmp.eq.s32.totalorder %s22, 1
      %p138 = scmp.ne.s32.totalorder %s133, %s135
      %p139 = scmp.eq.s32.totalorder %s22, 0
      %p140 = por %p138, %p139
      %p141 = scmp.ne.s32.totalorder %s133, %s135
      %p142 = scmp.eq.s32.totalorder %s27, 1
      %p143 = por %p141, %p142
      %p144 = scmp.ne.s32.totalorder %s135, %s136
      %p145 = scmp.eq.s32.totalorder %s27, 0
      %p146 = por %p144, %p145
      %p147 = scmp.ne.s32.totalorder %s135, %s136
      %p148 = scmp.eq.s32.totalorder %s28, 1
      %p149 = por %p147, %p148
      %p151 = scmp.ne.s32.totalorder %s136, %s150
      %p152 = scmp.eq.s32.totalorder %s28, 0
      %p153 = por %p151, %p152
      %s154 = ssub.s32 %s29, %s41
      %s155 = ssub.s32 %s30, %s37
      %s156 = sor.u32 %s154, %s155
      %p157 = scmp.eq.s32.totalorder %s156, 0
      %s159 = sadd.s32 %s158, 1
      %s160 = scalar_select %p157, %s158, %s159
      %p163 = pneg %p157
      %p164 = scmp.eq.s32.totalorder %s22, 1
      %p165 = por %p163, %p164
      %p166 = scmp.ne.s32.totalorder %s158, %s161
      %p167 = scmp.eq.s32.totalorder %s22, 0
      %p168 = por %p166, %p167
      %p169 = scmp.ne.s32.totalorder %s158, %s161
      %p170 = scmp.eq.s32.totalorder %s27, 1
      %p171 = por %p169, %p170
      %p172 = scmp.ne.s32.totalorder %s161, %s162
      %p173 = scmp.eq.s32.totalorder %s27, 0
      %p174 = por %p172, %p173
      %p175 = scmp.ne.s32.totalorder %s161, %s162
      %p176 = scmp.eq.s32.totalorder %s28, 1
      %p177 = por %p175, %p176
      %p179 = scmp.ne.s32.totalorder %s162, %s178
      %p180 = scmp.eq.s32.totalorder %s28, 0
      %p181 = por %p179, %p180
      %s182 = ssub.s32 %s29, %s41
      %s183 = ssub.s32 %s30, %s37
      %s184 = sor.u32 %s182, %s183
      %p185 = scmp.eq.s32.totalorder %s184, 0
      %s187 = sadd.s32 %s186, 1
      %s188 = scalar_select %p185, %s186, %s187
      %p191 = pneg %p185
      %p192 = scmp.eq.s32.totalorder %s22, 1
      %p193 = por %p191, %p192
      %p194 = scmp.ne.s32.totalorder %s186, %s189
      %p195 = scmp.eq.s32.totalorder %s22, 0
      %p196 = por %p194, %p195
      %p197 = scmp.ne.s32.totalorder %s186, %s189
      %p198 = scmp.eq.s32.totalorder %s27, 1
      %p199 = por %p197, %p198
      %p200 = scmp.ne.s32.totalorder %s189, %s190
      %p201 = scmp.eq.s32.totalorder %s27, 0
      %p202 = por %p200, %p201
      %p203 = scmp.ne.s32.totalorder %s189, %s190
      %p204 = scmp.eq.s32.totalorder %s28, 1
      %p205 = por %p203, %p204
      %p207 = scmp.ne.s32.totalorder %s190, %s206
      %p208 = scmp.eq.s32.totalorder %s28, 0
      %p209 = por %p207, %p208
      %p210 = scmp.le.s32.totalorder 1, %s22
      %p211 = scmp.lt.s32.totalorder %s22, 3
      %p212 = pnand %p210, %p211
      %p213 = pneg %p212
      // Predicated region
      $region9: #{tpu_custom_call.1} parent=5 // pred_check
        _
      $region10: #{tpu_custom_call.1} parent=5 // pred_check_branch
        %215 = sbr.rel (%p212) target = $region12
      $region11: #{tpu_custom_call.1} parent=5 // pred_region
        %s216 = ssub.s32 %s22, 1
        // Predicated region
        $region13: #{tpu_custom_call.1} parent=11 // pred_check
          %p217 = pneg %p83
        $region14: #{tpu_custom_call.1} parent=11 // pred_check_branch
          %219 = sbr.rel (%p217) target = $region16
        $region15: #{tpu_custom_call.1} parent=11 // pred_region
          _
        $region16: #{tpu_custom_call.1} parent=11 // pred_fallthru
          _
        // Predicated region
        $region17: #{tpu_custom_call.1} parent=11 // pred_check
          %p220 = pneg %p104
        $region18: #{tpu_custom_call.1} parent=11 // pred_check_branch
          %222 = sbr.rel (%p220) target = $region20
        $region19: #{tpu_custom_call.1} parent=11 // pred_region
          _
        $region20: #{tpu_custom_call.1} parent=11 // pred_fallthru
          _
        // Predicated region
        $region21: #{tpu_custom_call.1} parent=11 // pred_check
          %p223 = pneg %p125
        $region22: #{tpu_custom_call.1} parent=11 // pred_check_branch
          %225 = sbr.rel (%p223) target = $region24
        $region23: #{tpu_custom_call.1} parent=11 // pred_region
          _
        $region24: #{tpu_custom_call.1} parent=11 // pred_fallthru
          _
        // Predicated region
        $region25: #{tpu_custom_call.1} parent=11 // pred_check
          %p226 = pneg %p146
        $region26: #{tpu_custom_call.1} parent=11 // pred_check_branch
          %228 = sbr.rel (%p226) target = $region28
        $region27: #{tpu_custom_call.1} parent=11 // pred_region
          _
        $region28: #{tpu_custom_call.1} parent=11 // pred_fallthru
          _
      $region12: #{tpu_custom_call.1} parent=5 // pred_fallthru
        _
      %p229 = scmp.lt.s32.totalorder %s22, 2
      // Predicated region
      $region29: #{tpu_custom_call.1} parent=5 // pred_check
        %p230 = pneg %p229
      $region30: #{tpu_custom_call.1} parent=5 // pred_check_branch
        %232 = sbr.rel (%p230) target = $region32
      $region31: #{tpu_custom_call.1} parent=5 // pred_region
        // Predicated region
        $region33: #{tpu_custom_call.1} parent=31 // pred_check
          %p233 = pneg %p56
        $region34: #{tpu_custom_call.1} parent=31 // pred_check_branch
          %235 = sbr.rel (%p233) target = $region36
        $region35: #{tpu_custom_call.1} parent=31 // pred_region
          %s236 = sand.u32 %s46, 1
          %s237 = scalar_lea.sflag [#allocation3], %s236
          %s238 = sand.u32 %s46, 1
          %s239 = smul.addr %s238, 32
          %s240 = scalar_lea.vmem [#allocation2], %s239
          %s241 = smul.u32 2, %s30
          %s243 = ssub.s32 512, 512
          %244 = vsyncadd %s237, %s243
          %s245 = smul.addr %s29, 4
          %s246 = sadd.s32 %s241, %s245
          %s247 = smul.addr %s246, 128
          %s248 = scalar_lea.hbm %s0, %s247
          %s249 = sshll.u32 %s240, 4
          %s250 = int_to_ptr.vmem [resolvable:$true] %s249
          %255 = dma.hbm_to_vmem [thread:$0]  %s248, 512, %s250, %s237, 256, 256, 16
        $region36: #{tpu_custom_call.1} parent=31 // pred_fallthru
          _
      $region32: #{tpu_custom_call.1} parent=5 // pred_fallthru
        _
      %p256 = scmp.le.s32.totalorder 1, %s22
      %p257 = scmp.lt.s32.totalorder %s22, 3
      %p258 = pnand %p256, %p257
      %p259 = pneg %p258
      // Predicated region
      $region37: #{tpu_custom_call.1} parent=5 // pred_check
        _
      $region38: #{tpu_custom_call.1} parent=5 // pred_check_branch
        %261 = sbr.rel (%p258) target = $region40
      $region39: #{tpu_custom_call.1} parent=5 // pred_region
        %s262 = ssub.s32 %s22, 1
        %s263 = sand.u32 %s49, 1
        %s264 = scalar_lea.sflag [#allocation3], %s263
        %s265 = sand.u32 %s49, 1
        %s266 = smul.addr %s265, 32
        %s267 = scalar_lea.vmem [#allocation2], %s266
        // Predicated region
        $region41: #{tpu_custom_call.1} parent=39 // pred_check
          %p268 = pneg %p62
        $region42: #{tpu_custom_call.1} parent=39 // pred_check_branch
          %270 = sbr.rel (%p268) target = $region44
        $region43: #{tpu_custom_call.1} parent=39 // pred_region
          %271 = dma.done %s264, 512
        $region44: #{tpu_custom_call.1} parent=39 // pred_fallthru
          _
        %s272 = sand.u32 %s49, 1
        %s273 = scalar_lea.sflag [#allocation3], %s272
        %s274 = sand.u32 %s49, 1
        %s275 = smul.addr %s274, 32
        %s276 = scalar_lea.vmem [#allocation2], %s275
        %p277 = pneg %p62
        %p278 = pneg %p59
        %p279 = pneg %p83
        %p280 = pneg %p80
        %p281 = pneg %p104
        %p282 = pneg %p101
        %p283 = pneg %p125
        %p284 = pneg %p122
        %p285 = pneg %p146
        %p286 = pneg %p143
        %p287 = pneg %p174
        %p288 = pneg %p171
        %s289 = sand.u32 %s161, 1
        %s290 = scalar_lea.sflag [#allocation4], %s289
        %s291 = sand.u32 %s161, 1
        %s292 = smul.addr %s291, 256
        %s293 = scalar_lea.vmem [#allocation5], %s292
        %p294 = pneg %p202
        %p295 = pneg %p199
        %s296 = sand.u32 %s189, 1
        %s297 = scalar_lea.sflag [#allocation7], %s296
        %s298 = sand.u32 %s189, 1
        %s299 = smul.addr %s298, 16
        %s300 = scalar_lea.vmem [#allocation6], %s299
        %s301 = smul.u32 2, %s32
        %s302 = smul.u32 2, %s32
        %s303 = smul.u32 2, %s32
        %v304 = vld [vmem:[%s267] sm:$0xff]
        %v305 = vld [vmem:[%s267 + $0x8] sm:$0xff]
        %v306 = vld [vmem:[%s267 + $0x10] sm:$0xff]
        %v307 = vld [vmem:[%s267 + $0x18] sm:$0xff]
        %v308 = vld [vmem:[%s1] sm:$0xff]
        %v309 = vld [vmem:[%s3] sm:$0xff]
        %311 = vset.pattern.permute.xlu0 0
        %312 = vperm.xlu0 %311, %v309
        %v313 = vpop.permute.xlu0 %312
        %vm315 = vcmask 130048
        %v317 = vsel %vm315, %v308, 0
        %319 = vmatprep.subr.mxu0 0.0
        %320 = vmatpush1.msra.mxu0 0.0
        %321 = vmatprep.subr.mxu0 0.0
        %322 = vmatpush1.msra.mxu0 0.0
        %323 = vmatprep.subr.mxu0 0.0
        %324 = vmatpush1.msra.mxu0 0.0
        %325 = vmatprep.subr.mxu0 0.0
        %326 = vmatpush1.msra.mxu0 0.0
        %327 = vmatprep.subr.mxu0 0.0
        %328 = vmatpush1.msra.mxu0 0.0
        %329 = vmatprep.subr.mxu0 0.0
        %330 = vmatpush1.msra.mxu0 0.0
        %331 = vmatprep.subr.mxu0 0.0
        %332 = vmatpush1.msra.mxu0 0.0
        %333 = vmatprep.subr.mxu0 0.0
        %334 = vmatpush1.msra.mxu0 0.0
        %335 = vmatprep.subr.mxu0 0.0
        %336 = vmatpush1.msra.mxu0 0.0
        %337 = vmatprep.subr.mxu0 0.0
        %338 = vmatpush1.msra.mxu0 0.0
        %339 = vmatprep.subr.mxu0 0.0
        %340 = vmatpush1.msra.mxu0 0.0
        %341 = vmatprep.subr.mxu0 0.0
        %342 = vmatpush1.msra.mxu0 0.0
        %343 = vmatprep.subr.mxu0 0.0
        %344 = vmatpush1.msra.mxu0 0.0
        %345 = vmatprep.subr.mxu0 0.0
        %346 = vmatpush1.msra.mxu0 0.0
        %347 = vmatprep.subr.mxu0 %v307
        %348 = vmatpush1.msra.mxu0 %v306
        %349 = vmatprep.subr.mxu0 %v305
        %350 = vmatpush1.msra.mxu0 %v304
        %351 = vmatprep.subr.mxu0 0.0
        %352 = vmatpush2.msra.mxu0 0.0
        %353 = vmatprep.subr.mxu0 0.0
        %354 = vmatpush2.msra.mxu0 0.0
        %355 = vmatprep.subr.mxu0 0.0
        %356 = vmatpush2.msra.mxu0 0.0
        %357 = vmatprep.subr.mxu0 0.0
        %358 = vmatpush2.msra.mxu0 0.0
        %359 = vmatprep.subr.mxu0 0.0
        %360 = vmatpush2.msra.mxu0 0.0
        %361 = vmatprep.subr.mxu0 0.0
        %362 = vmatpush2.msra.mxu0 0.0
        %363 = vmatprep.subr.mxu0 0.0
        %364 = vmatpush2.msra.mxu0 0.0
        %365 = vmatprep.subr.mxu0 0.0
        %366 = vmatpush2.msra.mxu0 0.0
        %367 = vmatprep.subr.mxu0 0.0
        %368 = vmatpush2.msra.mxu0 0.0
        %369 = vmatprep.subr.mxu0 0.0
        %370 = vmatpush2.msra.mxu0 0.0
        %371 = vmatprep.subr.mxu0 0.0
        %372 = vmatpush2.msra.mxu0 0.0
        %373 = vmatprep.subr.mxu0 0.0
        %374 = vmatpush2.msra.mxu0 0.0
        %375 = vmatprep.subr.mxu0 0.0
        %376 = vmatpush2.msra.mxu0 0.0
        %377 = vmatprep.subr.mxu0 0.0
        %378 = vmatpush2.msra.mxu0 0.0
        %379 = vmatprep.subr.mxu0 0.0
        %380 = vmatpush2.msra.mxu0 0.0
        %381 = vmatprep.subr.mxu0 0.0
        %382 = vmatpush2.msra.mxu0 0.0
        %383 = vmatprep.mubr.f32.mxu0 0.0
        %384 = vmatmul.mubr.f32.gmra.mxu0 %v317
        %v385 = vpop.f32.mrf.mxu0
        %v386 = vadd.f32 %v313, %v385
        %v387 = vpop.f32.mrf.mxu0
        %v388 = vadd.f32 %v313, %v387
        %389 = vdwg.mxu0
        %v390 = vld [vmem:[%s2] sm:$0xff]
        %v391 = vld [vmem:[%s2 + $0x8] sm:$0xff]
        %v392 = vld [vmem:[%s4] sm:$0xff]
        %v393 = vld [vmem:[%s4 + $0x8] sm:$0xff]
        %395 = vset.pattern.permute.xlu0 0
        %396 = vperm.xlu0 %395, %v392
        %v397 = vpop.permute.xlu0 %396
        %400 = vset.pattern.permute.xlu0 0
        %401 = vperm.xlu0 %400, %v393
        %v402 = vpop.permute.xlu0 %401
        %v405 = vsel %vm315, %v390, 0
        %v408 = vsel %vm315, %v391, 0
        %410 = vmatprep.subr.mxu0 0.0
        %411 = vmatpush1.msra.mxu0 0.0
        %412 = vmatprep.subr.mxu0 0.0
        %413 = vmatpush1.msra.mxu0 0.0
        %414 = vmatprep.subr.mxu0 0.0
        %415 = vmatpush1.msra.mxu0 0.0
        %416 = vmatprep.subr.mxu0 0.0
        %417 = vmatpush1.msra.mxu0 0.0
        %418 = vmatprep.subr.mxu0 0.0
        %419 = vmatpush1.msra.mxu0 0.0
        %420 = vmatprep.subr.mxu0 0.0
        %421 = vmatpush1.msra.mxu0 0.0
        %422 = vmatprep.subr.mxu0 0.0
        %423 = vmatpush1.msra.mxu0 0.0
        %424 = vmatprep.subr.mxu0 0.0
        %425 = vmatpush1.msra.mxu0 0.0
        %426 = vmatprep.subr.mxu0 0.0
        %427 = vmatpush1.msra.mxu0 0.0
        %428 = vmatprep.subr.mxu0 0.0
        %429 = vmatpush1.msra.mxu0 0.0
        %430 = vmatprep.subr.mxu0 0.0
        %431 = vmatpush1.msra.mxu0 0.0
        %432 = vmatprep.subr.mxu0 0.0
        %433 = vmatpush1.msra.mxu0 0.0
        %434 = vmatprep.subr.mxu0 0.0
        %435 = vmatpush1.msra.mxu0 0.0
        %436 = vmatprep.subr.mxu0 0.0
        %437 = vmatpush1.msra.mxu0 0.0
        %438 = vmatprep.subr.mxu0 %v307
        %439 = vmatpush1.msra.mxu0 %v306
        %440 = vmatprep.subr.mxu0 %v305
        %441 = vmatpush1.msra.mxu0 %v304
        %442 = vmatprep.subr.mxu0 0.0
        %443 = vmatpush2.msra.mxu0 0.0
        %444 = vmatprep.subr.mxu0 0.0
        %445 = vmatpush2.msra.mxu0 0.0
        %446 = vmatprep.subr.mxu0 0.0
        %447 = vmatpush2.msra.mxu0 0.0
        %448 = vmatprep.subr.mxu0 0.0
        %449 = vmatpush2.msra.mxu0 0.0
        %450 = vmatprep.subr.mxu0 0.0
        %451 = vmatpush2.msra.mxu0 0.0
        %452 = vmatprep.subr.mxu0 0.0
        %453 = vmatpush2.msra.mxu0 0.0
        %454 = vmatprep.subr.mxu0 0.0
        %455 = vmatpush2.msra.mxu0 0.0
        %456 = vmatprep.subr.mxu0 0.0
        %457 = vmatpush2.msra.mxu0 0.0
        %458 = vmatprep.subr.mxu0 0.0
        %459 = vmatpush2.msra.mxu0 0.0
        %460 = vmatprep.subr.mxu0 0.0
        %461 = vmatpush2.msra.mxu0 0.0
        %462 = vmatprep.subr.mxu0 0.0
        %463 = vmatpush2.msra.mxu0 0.0
        %464 = vmatprep.subr.mxu0 0.0
        %465 = vmatpush2.msra.mxu0 0.0
        %466 = vmatprep.subr.mxu0 0.0
        %467 = vmatpush2.msra.mxu0 0.0
        %468 = vmatprep.subr.mxu0 0.0
        %469 = vmatpush2.msra.mxu0 0.0
        %470 = vmatprep.subr.mxu0 0.0
        %471 = vmatpush2.msra.mxu0 0.0
        %472 = vmatprep.subr.mxu0 0.0
        %473 = vmatpush2.msra.mxu0 0.0
        %474 = vmatprep.mubr.f32.mxu0 0.0
        %475 = vmatmul.mubr.f32.gmra.mxu0 %v405
        %v476 = vpop.f32.mrf.mxu0
        %v477 = vadd.f32 %v397, %v476
        %v478 = vpop.f32.mrf.mxu0
        %v479 = vadd.f32 %v397, %v478
        %480 = vmatprep.mubr.f32.mxu0 0.0
        %481 = vmatmul.mubr.f32.gmra.mxu0 %v408
        %v482 = vpop.f32.mrf.mxu0
        %v483 = vadd.f32 %v402, %v482
        %v484 = vpop.f32.mrf.mxu0
        %v485 = vadd.f32 %v402, %v484
        %486 = vdwg.mxu0
        %v487 = vrot.slane %v386, 4
        %v488 = vmax.f32 %v386, %v487
        %v489 = vrot.slane %v488, 2
        %v490 = vmax.f32 %v488, %v489
        %v491 = vrot.slane %v490, 1
        %v492 = vmax.f32 %v490, %v491
        %v493 = vrot.slane %v388, 4
        %v494 = vmax.f32 %v388, %v493
        %v495 = vrot.slane %v494, 2
        %v496 = vmax.f32 %v494, %v495
        %v497 = vrot.slane %v496, 1
        %v498 = vmax.f32 %v496, %v497
        %v499 = vsub.f32 %v386, %v492
        %v500 = vsub.f32 %v388, %v498
        %v501 = vmul.f32 %v499, 1.442695
        %v502 = vpow.pop %v501
        %v503 = vmul.f32 %v500, 1.442695
        %v504 = vpow.pop %v503
        %v505 = vrot.slane %v502, 4
        %v506 = vadd.f32 %v502, %v505
        %v507 = vrot.slane %v506, 2
        %v508 = vadd.f32 %v506, %v507
        %v509 = vrot.slane %v508, 1
        %v510 = vadd.f32 %v508, %v509
        %v511 = vrot.slane %v504, 4
        %v512 = vadd.f32 %v504, %v511
        %v513 = vrot.slane %v512, 2
        %v514 = vadd.f32 %v512, %v513
        %v515 = vrot.slane %v514, 1
        %v516 = vadd.f32 %v514, %v515
        %v517 = vrcp.pop %v510
        %v518 = vrcp.pop %v516
        %v519 = vmul.f32 %v502, %v517
        %v520 = vmul.f32 %v504, %v518
        %521 = vst [vmem:[%s300] sm:$0xff] %v519
        %522 = vst [vmem:[%s300 + $0x8] sm:$0xff] %v520
        %v527 = vcombine.low %v477, %v479
        %v528 = vcombine.high %v477, %v479
        %v530 = vunpack.c.l.s4 1966171168
        %v531 = vunpack.c.0.s8 %v530
        %v532 = vlaneseq
        %v533 = vshrl.u32 %v532, 7
        %v534 = vsub.s32 %v531, %v533
        %v535 = vrot.slane %v527, %v534
        %v537 = vunpack.c.l.s4 1966171168
        %v538 = vunpack.c.0.s8 %v537
        %v539 = vlaneseq
        %v540 = vshrl.u32 %v539, 7
        %v541 = vsub.s32 %v538, %v540
        %v542 = vrot.slane %v528, %v541
        %v543 = vcombine.high %v535, %v535
        %v544 = vcombine.high %v542, %v542
        %v546 = vunpack.c.l.s4 1966171168
        %v547 = vunpack.c.0.s8 %v546
        %v548 = vlaneseq
        %v549 = vshrl.u32 %v548, 7
        %v550 = vsub.s32 %v547, %v549
        %v551 = vrot.slane %v535, %v550
        %v553 = vunpack.c.l.s4 1966171168
        %v554 = vunpack.c.0.s8 %v553
        %v555 = vlaneseq
        %v556 = vshrl.u32 %v555, 7
        %v557 = vsub.s32 %v554, %v556
        %v558 = vrot.slane %v542, %v557
        %v560 = vunpack.c.l.s4 1966171168
        %v561 = vunpack.c.0.s8 %v560
        %v562 = vlaneseq
        %v563 = vshrl.u32 %v562, 7
        %v564 = vsub.s32 %v561, %v563
        %v565 = vrot.slane %v543, %v564
        %v567 = vunpack.c.l.s4 1966171168
        %v568 = vunpack.c.0.s8 %v567
        %v569 = vlaneseq
        %v570 = vshrl.u32 %v569, 7
        %v571 = vsub.s32 %v568, %v570
        %v572 = vrot.slane %v544, %v571
        %v573 = vcombine.high %v551, %v551
        %v574 = vcombine.high %v558, %v558
        %v575 = vcombine.high %v565, %v565
        %v576 = vcombine.high %v572, %v572
        %v577 = vcombine.low %v483, %v485
        %v578 = vcombine.high %v483, %v485
        %v580 = vunpack.c.l.s4 1966171168
        %v581 = vunpack.c.0.s8 %v580
        %v582 = vlaneseq
        %v583 = vshrl.u32 %v582, 7
        %v584 = vsub.s32 %v581, %v583
        %v585 = vrot.slane %v577, %v584
        %v587 = vunpack.c.l.s4 1966171168
        %v588 = vunpack.c.0.s8 %v587
        %v589 = vlaneseq
        %v590 = vshrl.u32 %v589, 7
        %v591 = vsub.s32 %v588, %v590
        %v592 = vrot.slane %v578, %v591
        %v593 = vcombine.high %v585, %v585
        %v594 = vcombine.high %v592, %v592
        %v596 = vunpack.c.l.s4 1966171168
        %v597 = vunpack.c.0.s8 %v596
        %v598 = vlaneseq
        %v599 = vshrl.u32 %v598, 7
        %v600 = vsub.s32 %v597, %v599
        %v601 = vrot.slane %v585, %v600
        %v603 = vunpack.c.l.s4 1966171168
        %v604 = vunpack.c.0.s8 %v603
        %v605 = vlaneseq
        %v606 = vshrl.u32 %v605, 7
        %v607 = vsub.s32 %v604, %v606
        %v608 = vrot.slane %v592, %v607
        %v610 = vunpack.c.l.s4 1966171168
        %v611 = vunpack.c.0.s8 %v610
        %v612 = vlaneseq
        %v613 = vshrl.u32 %v612, 7
        %v614 = vsub.s32 %v611, %v613
        %v615 = vrot.slane %v593, %v614
        %v617 = vunpack.c.l.s4 1966171168
        %v618 = vunpack.c.0.s8 %v617
        %v619 = vlaneseq
        %v620 = vshrl.u32 %v619, 7
        %v621 = vsub.s32 %v618, %v620
        %v622 = vrot.slane %v594, %v621
        %v623 = vcombine.high %v601, %v601
        %v624 = vcombine.high %v608, %v608
        %v625 = vcombine.high %v615, %v615
        %v626 = vcombine.high %v622, %v622
        %v627 = vlaneseq
        %v628 = vshrl.u32 %v627, 7
        %v629 = vsub.s32 0, %v628
        %v630 = vrot.slane %v551, %v629
        %v631 = vlaneseq
        %v632 = vshrl.u32 %v631, 7
        %v633 = vsub.s32 1, %v632
        %v634 = vrot.slane %v551, %v633
        %v635 = vlaneseq
        %v636 = vshrl.u32 %v635, 7
        %v637 = vsub.s32 0, %v636
        %v638 = vrot.slane %v565, %v637
        %v639 = vlaneseq
        %v640 = vshrl.u32 %v639, 7
        %v641 = vsub.s32 1, %v640
        %v642 = vrot.slane %v565, %v641
        %v643 = vlaneseq
        %v644 = vshrl.u32 %v643, 7
        %v645 = vsub.s32 0, %v644
        %v646 = vrot.slane %v573, %v645
        %v647 = vlaneseq
        %v648 = vshrl.u32 %v647, 7
        %v649 = vsub.s32 1, %v648
        %v650 = vrot.slane %v573, %v649
        %v651 = vlaneseq
        %v652 = vshrl.u32 %v651, 7
        %v653 = vsub.s32 0, %v652
        %v654 = vrot.slane %v575, %v653
        %v655 = vlaneseq
        %v656 = vshrl.u32 %v655, 7
        %v657 = vsub.s32 1, %v656
        %v658 = vrot.slane %v575, %v657
        %v659 = vlaneseq
        %v660 = vshrl.u32 %v659, 7
        %v661 = vsub.s32 0, %v660
        %v662 = vrot.slane %v558, %v661
        %v663 = vlaneseq
        %v664 = vshrl.u32 %v663, 7
        %v665 = vsub.s32 1, %v664
        %v666 = vrot.slane %v558, %v665
        %v667 = vlaneseq
        %v668 = vshrl.u32 %v667, 7
        %v669 = vsub.s32 0, %v668
        %v670 = vrot.slane %v572, %v669
        %v671 = vlaneseq
        %v672 = vshrl.u32 %v671, 7
        %v673 = vsub.s32 1, %v672
        %v674 = vrot.slane %v572, %v673
        %v675 = vlaneseq
        %v676 = vshrl.u32 %v675, 7
        %v677 = vsub.s32 0, %v676
        %v678 = vrot.slane %v574, %v677
        %v679 = vlaneseq
        %v680 = vshrl.u32 %v679, 7
        %v681 = vsub.s32 1, %v680
        %v682 = vrot.slane %v574, %v681
        %v683 = vlaneseq
        %v684 = vshrl.u32 %v683, 7
        %v685 = vsub.s32 0, %v684
        %v686 = vrot.slane %v576, %v685
        %v687 = vlaneseq
        %v688 = vshrl.u32 %v687, 7
        %v689 = vsub.s32 1, %v688
        %v690 = vrot.slane %v576, %v689
        %v691 = vlaneseq
        %v692 = vshrl.u32 %v691, 7
        %v693 = vsub.s32 0, %v692
        %v694 = vrot.slane %v601, %v693
        %v695 = vlaneseq
        %v696 = vshrl.u32 %v695, 7
        %v697 = vsub.s32 1, %v696
        %v698 = vrot.slane %v601, %v697
        %v699 = vlaneseq
        %v700 = vshrl.u32 %v699, 7
        %v701 = vsub.s32 0, %v700
        %v702 = vrot.slane %v615, %v701
        %v703 = vlaneseq
        %v704 = vshrl.u32 %v703, 7
        %v705 = vsub.s32 1, %v704
        %v706 = vrot.slane %v615, %v705
        %v707 = vlaneseq
        %v708 = vshrl.u32 %v707, 7
        %v709 = vsub.s32 0, %v708
        %v710 = vrot.slane %v623, %v709
        %v711 = vlaneseq
        %v712 = vshrl.u32 %v711, 7
        %v713 = vsub.s32 1, %v712
        %v714 = vrot.slane %v623, %v713
        %v715 = vlaneseq
        %v716 = vshrl.u32 %v715, 7
        %v717 = vsub.s32 0, %v716
        %v718 = vrot.slane %v625, %v717
        %v719 = vlaneseq
        %v720 = vshrl.u32 %v719, 7
        %v721 = vsub.s32 1, %v720
        %v722 = vrot.slane %v625, %v721
        %v723 = vlaneseq
        %v724 = vshrl.u32 %v723, 7
        %v725 = vsub.s32 0, %v724
        %v726 = vrot.slane %v608, %v725
        %v727 = vlaneseq
        %v728 = vshrl.u32 %v727, 7
        %v729 = vsub.s32 1, %v728
        %v730 = vrot.slane %v608, %v729
        %v731 = vlaneseq
        %v732 = vshrl.u32 %v731, 7
        %v733 = vsub.s32 0, %v732
        %v734 = vrot.slane %v622, %v733
        %v735 = vlaneseq
        %v736 = vshrl.u32 %v735, 7
        %v737 = vsub.s32 1, %v736
        %v738 = vrot.slane %v622, %v737
        %v739 = vlaneseq
        %v740 = vshrl.u32 %v739, 7
        %v741 = vsub.s32 0, %v740
        %v742 = vrot.slane %v624, %v741
        %v743 = vlaneseq
        %v744 = vshrl.u32 %v743, 7
        %v745 = vsub.s32 1, %v744
        %v746 = vrot.slane %v624, %v745
        %v747 = vlaneseq
        %v748 = vshrl.u32 %v747, 7
        %v749 = vsub.s32 0, %v748
        %v750 = vrot.slane %v626, %v749
        %v751 = vlaneseq
        %v752 = vshrl.u32 %v751, 7
        %v753 = vsub.s32 1, %v752
        %v754 = vrot.slane %v626, %v753
        %v787 = vmul.f32 %v630, %v519
        %v788 = vmul.f32 %v634, %v520
        %v789 = vmul.f32 %v638, %v519
        %v790 = vmul.f32 %v642, %v520
        %v791 = vmul.f32 %v646, %v519
        %v792 = vmul.f32 %v650, %v520
        %v793 = vmul.f32 %v654, %v519
        %v794 = vmul.f32 %v658, %v520
        %v795 = vmul.f32 %v662, %v519
        %v796 = vmul.f32 %v666, %v520
        %v797 = vmul.f32 %v670, %v519
        %v798 = vmul.f32 %v674, %v520
        %v799 = vmul.f32 %v678, %v519
        %v800 = vmul.f32 %v682, %v520
        %v801 = vmul.f32 %v686, %v519
        %v802 = vmul.f32 %v690, %v520
        %v803 = vmul.f32 %v694, %v519
        %v804 = vmul.f32 %v698, %v520
        %v805 = vmul.f32 %v702, %v519
        %v806 = vmul.f32 %v706, %v520
        %v807 = vmul.f32 %v710, %v519
        %v808 = vmul.f32 %v714, %v520
        %v809 = vmul.f32 %v718, %v519
        %v810 = vmul.f32 %v722, %v520
        %v811 = vmul.f32 %v726, %v519
        %v812 = vmul.f32 %v730, %v520
        %v813 = vmul.f32 %v734, %v519
        %v814 = vmul.f32 %v738, %v520
        %v815 = vmul.f32 %v742, %v519
        %v816 = vmul.f32 %v746, %v520
        %v817 = vmul.f32 %v750, %v519
        %v818 = vmul.f32 %v754, %v520
        %819 = vst [vmem:[%s293] sm:$0xff] %v787
        %820 = vst [vmem:[%s293 + $0x8] sm:$0xff] %v788
        %821 = vst [vmem:[%s293 + $0x10] sm:$0xff] %v789
        %822 = vst [vmem:[%s293 + $0x18] sm:$0xff] %v790
        %823 = vst [vmem:[%s293 + $0x20] sm:$0xff] %v791
        %824 = vst [vmem:[%s293 + $0x28] sm:$0xff] %v792
        %825 = vst [vmem:[%s293 + $0x30] sm:$0xff] %v793
        %826 = vst [vmem:[%s293 + $0x38] sm:$0xff] %v794
        %827 = vst [vmem:[%s293 + $0x40] sm:$0xff] %v795
        %828 = vst [vmem:[%s293 + $0x48] sm:$0xff] %v796
        %829 = vst [vmem:[%s293 + $0x50] sm:$0xff] %v797
        %830 = vst [vmem:[%s293 + $0x58] sm:$0xff] %v798
        %831 = vst [vmem:[%s293 + $0x60] sm:$0xff] %v799
        %832 = vst [vmem:[%s293 + $0x68] sm:$0xff] %v800
        %833 = vst [vmem:[%s293 + $0x70] sm:$0xff] %v801
        %834 = vst [vmem:[%s293 + $0x78] sm:$0xff] %v802
        %835 = vst [vmem:[%s293 + $0x80] sm:$0xff] %v803
        %836 = vst [vmem:[%s293 + $0x88] sm:$0xff] %v804
        %837 = vst [vmem:[%s293 + $0x90] sm:$0xff] %v805
        %838 = vst [vmem:[%s293 + $0x98] sm:$0xff] %v806
        %839 = vst [vmem:[%s293 + $0xa0] sm:$0xff] %v807
        %840 = vst [vmem:[%s293 + $0xa8] sm:$0xff] %v808
        %841 = vst [vmem:[%s293 + $0xb0] sm:$0xff] %v809
        %842 = vst [vmem:[%s293 + $0xb8] sm:$0xff] %v810
        %843 = vst [vmem:[%s293 + $0xc0] sm:$0xff] %v811
        %844 = vst [vmem:[%s293 + $0xc8] sm:$0xff] %v812
        %845 = vst [vmem:[%s293 + $0xd0] sm:$0xff] %v813
        %846 = vst [vmem:[%s293 + $0xd8] sm:$0xff] %v814
        %847 = vst [vmem:[%s293 + $0xe0] sm:$0xff] %v815
        %848 = vst [vmem:[%s293 + $0xe8] sm:$0xff] %v816
        %849 = vst [vmem:[%s293 + $0xf0] sm:$0xff] %v817
        %850 = vst [vmem:[%s293 + $0xf8] sm:$0xff] %v818
        %s851 = sand.u32 %s161, 1
        %s852 = scalar_lea.sflag [#allocation4], %s851
        %s853 = sand.u32 %s161, 1
        %s854 = smul.addr %s853, 256
        %s855 = scalar_lea.vmem [#allocation5], %s854
        %s856 = sand.u32 %s189, 1
        %s857 = scalar_lea.sflag [#allocation7], %s856
        %s858 = sand.u32 %s189, 1
        %s859 = smul.addr %s858, 16
        %s860 = scalar_lea.vmem [#allocation6], %s859
        // Predicated region
        $region45: #{tpu_custom_call.1} parent=39 // pred_check
          %p861 = pneg %p171
        $region46: #{tpu_custom_call.1} parent=39 // pred_check_branch
          %863 = sbr.rel (%p861) target = $region48
        $region47: #{tpu_custom_call.1} parent=39 // pred_region
          %s864 = smul.u32 2, %s32
          %s866 = ssub.s32 4096, 4096
          %867 = vsyncadd %s852, %s866
          %s868 = smul.addr %s31, 32
          %s869 = sadd.s32 %s864, %s868
          %s870 = smul.addr %s869, 128
          %s871 = scalar_lea.hbm %s5, %s870
          %s872 = sshll.u32 %s855, 4
          %s873 = int_to_ptr.vmem [resolvable:$true] %s872
          %878 = dma.vmem_to_hbm [thread:$0]  %s873, 4096, %s871, %s852, 256, 256, 16
        $region48: #{tpu_custom_call.1} parent=39 // pred_fallthru
          _
        // Predicated region
        $region49: #{tpu_custom_call.1} parent=39 // pred_check
          %p879 = pneg %p199
        $region50: #{tpu_custom_call.1} parent=39 // pred_check_branch
          %881 = sbr.rel (%p879) target = $region52
        $region51: #{tpu_custom_call.1} parent=39 // pred_region
          %s882 = smul.u32 2, %s32
          %s884 = ssub.s32 256, 256
          %885 = vsyncadd %s857, %s884
          %s886 = smul.addr %s31, 2
          %s887 = sadd.s32 %s882, %s886
          %s888 = smul.addr %s887, 128
          %s889 = scalar_lea.hbm %s6, %s888
          %s891 = sshll.u32 %s860, 4
          %s892 = int_to_ptr.vmem [resolvable:$true] %s891
          %894 = dma.vmem_to_hbm [thread:$0]  %s892, 256, %s889, %s857
        $region52: #{tpu_custom_call.1} parent=39 // pred_fallthru
          _
      $region40: #{tpu_custom_call.1} parent=5 // pred_fallthru
        _
      %p895 = scmp.le.s32.totalorder 2, %s22
      // Predicated region
      $region53: #{tpu_custom_call.1} parent=5 // pred_check
        %p896 = pneg %p895
      $region54: #{tpu_custom_call.1} parent=5 // pred_check_branch
        %898 = sbr.rel (%p896) target = $region56
      $region55: #{tpu_custom_call.1} parent=5 // pred_region
        %s899 = ssub.s32 %s22, 2
        // Predicated region
        $region57: #{tpu_custom_call.1} parent=55 // pred_check
          %p900 = pneg %p177
        $region58: #{tpu_custom_call.1} parent=55 // pred_check_branch
          %902 = sbr.rel (%p900) target = $region60
        $region59: #{tpu_custom_call.1} parent=55 // pred_region
          %s903 = sand.u32 %s162, 1
          %s904 = scalar_lea.sflag [#allocation4], %s903
          %s905 = sand.u32 %s162, 1
          %s906 = smul.addr %s905, 256
          %s907 = scalar_lea.vmem [#allocation5], %s906
          %908 = dma.done %s904, 4096
        $region60: #{tpu_custom_call.1} parent=55 // pred_fallthru
          _
        // Predicated region
        $region61: #{tpu_custom_call.1} parent=55 // pred_check
          %p909 = pneg %p205
        $region62: #{tpu_custom_call.1} parent=55 // pred_check_branch
          %911 = sbr.rel (%p909) target = $region64
        $region63: #{tpu_custom_call.1} parent=55 // pred_region
          %s912 = sand.u32 %s190, 1
          %s913 = scalar_lea.sflag [#allocation7], %s912
          %s914 = sand.u32 %s190, 1
          %s915 = smul.addr %s914, 16
          %s916 = scalar_lea.vmem [#allocation6], %s915
          %917 = dma.done %s913, 256
        $region64: #{tpu_custom_call.1} parent=55 // pred_fallthru
          _
      $region56: #{tpu_custom_call.1} parent=5 // pred_fallthru
        _
    $region6: #{tpu_custom_call.1} parent=1 // loop_footer
      %s26 = sadd.s32 1, %s22
    $region7: #{tpu_custom_call.1} parent=1 // loop_footer_branch
      %21 = sbr.rel target = $region3
    $region8: #{tpu_custom_call.1} parent=1 // loop_exit
      _
    %918 = vsyncpa [#allocation3], 1
    %s919 = scalar_lea.sflag [#allocation3], 1
    %920 = vsyncpa %s919, 1
    %921 = vsyncpa [#allocation4], 1
    %s922 = scalar_lea.sflag [#allocation4], 1
    %923 = vsyncpa %s922, 1
    %924 = vsyncpa [#allocation7], 1
    %s925 = scalar_lea.sflag [#allocation7], 1
    %926 = vsyncpa %s925, 1

</llo_original>
